<compile_context>
chip_gen: v6e
topology: v6e:2x2x1
jax: 0.10.0
libtpu: 0.0.40
codegen_flags: <defaults>
</compile_context>

<pallas_src>
import jax
import jax.numpy as jnp
from jax import lax
from jax.experimental import pallas as pl
from jax.experimental.pallas import tpu as pltpu

_H2 = 128  # width of the folded hidden layer (linear_2 output)


def _head_kernel(x_ref, w12_ref, b12_ref, w3_ref, b3_ref, o_ref):
    # Cast x on the VPU here (free, hidden under the tile DMA) rather than in the wrapper.
    x = x_ref[...].astype(w12_ref.dtype)
    # Folded Linear_1 -> dropout(p=0, identity) -> linear_2, f32 accumulation, bias + ReLU (f32 VPU).
    h = jnp.dot(x, w12_ref[...], preferred_element_type=jnp.float32)      # (tile_b, 128)
    h = jnp.maximum(h + b12_ref[...], 0.0)
    # Linear_3 as w3 (1,128) . h^T -> lane-dense (1, tile_b) row (Q@K^T-style dot_general),
    # so the sigmoid and the output store operate on dense lanes.
    z = lax.dot_general(w3_ref[...], h, (((1,), (1,)), ((), ())),
                        preferred_element_type=jnp.float32)               # (1, tile_b)
    z = z + b3_ref[...]
    # sigmoid(z) == 0.5 * tanh(0.5 * z) + 0.5  (one EUP transcendental, f32 epilogue).
    o_ref[...] = (0.5 * jnp.tanh(0.5 * z) + 0.5).astype(o_ref.dtype)


def _vmem_budget_cap():
    # ~75% of per-core VMEM: ~96 MiB on v5e/v6e (128 MiB), ~48 MiB per TensorCore on v7x (64 MiB).
    cap = 64 << 20
    try:
        info = pltpu.get_tpu_info()
        cap = int(getattr(info, "vmem_capacity_bytes", cap)) or cap
    except Exception:
        pass
    return max(16 << 20, (cap * 3) // 4)


def _tiled_footprint(tile_b, d, x_item, w_item):
    return (2 * tile_b * d * x_item          # double-buffered f32 x tiles
            + 2 * d * _H2 * w_item           # folded weight (2 buffers even with const index_map)
            + 2 * (2 * _H2 + 1) * 4          # biases + w3 row (2 buffers each, f32)
            + tile_b * _H2 * 4               # f32 intermediate h
            + 2 * tile_b * 4)                # double-buffered (1, tile_b) f32 output rows


def _pick_tile_b(B, D, x_item, w_item, budget):
    # Multi-MiB x tiles amortize the ~0.35us/grid-step overhead (the big lever at small D).
    target_x_tile_bytes = 4 << 20
    tile_b = max(128, ((target_x_tile_bytes // max(D * x_item, 1)) // 128) * 128)
    while tile_b > 128 and _tiled_footprint(tile_b, D, x_item, w_item) > budget:
        tile_b -= 128
    if B <= tile_b:
        return tile_b
    # v7x megacore balance: prefer an even number (>= 4) of grid steps; harmless on v5e/v6e.
    g = pl.cdiv(B, tile_b)
    if g < 4:
        g = 4
    elif g % 2:
        g += 1
    balanced = ((pl.cdiv(B, g) + 127) // 128) * 128
    return max(128, min(tile_b, balanced))


def _cost(rows, D, x_item, w_item):
    return pl.CostEstimate(
        flops=int(2 * rows * D * _H2 + 2 * rows * _H2 + 4 * rows),
        transcendentals=int(rows),
        bytes_accessed=int(rows * D * x_item + D * _H2 * w_item
                           + (2 * _H2 + 1) * 4 + rows * 4),
    )


def _single_shot_call(x, w12, b12, w3_row, b3, budget):
    """Whole batch in one grid point (full-extent blocks). Returns a (1, B) f32 row."""
    B, D = x.shape
    x_item = jnp.dtype(x.dtype).itemsize
    w_item = jnp.dtype(w12.dtype).itemsize
    need = (B * D * x_item + D * _H2 * w_item + B * _H2 * 4
            + (2 * _H2 + 1) * 4 + B * 4)
    full = lambda shape: pl.BlockSpec(shape, lambda: (0,) * len(shape))
    return pl.pallas_call(
        _head_kernel,
        out_shape=jax.ShapeDtypeStruct((1, B), jnp.float32),
        grid_spec=pltpu.PrefetchScalarGridSpec(
            num_scalar_prefetch=0,
            grid=(),
            in_specs=[full((B, D)),
                      full((D, _H2)), full((1, _H2)),
                      full((1, _H2)), full((1, 1))],
            out_specs=full((1, B)),
        ),
        compiler_params=pltpu.CompilerParams(
            vmem_limit_bytes=int(min(budget, max(4 << 20, 2 * need)))),
        cost_estimate=_cost(B, D, x_item, w_item),
    )(x, w12, b12, w3_row, b3)


def _tiled_call(x, w12, b12, w3_row, b3, tile_b, budget):
    """Processes the first (B // tile_b) * tile_b rows of x (full blocks only, no padding copy).
    Returns a (1, B_main) f32 row; the caller handles any remainder rows."""
    B, D = x.shape
    x_item = jnp.dtype(x.dtype).itemsize
    w_item = jnp.dtype(w12.dtype).itemsize
    grid_b = B // tile_b
    B_main = grid_b * tile_b
    footprint = _tiled_footprint(tile_b, D, x_item, w_item)
    vlimit = int(min(budget, max(4 << 20, int(1.5 * footprint))))
    return pl.pallas_call(
        _head_kernel,
        out_shape=jax.ShapeDtypeStruct((1, B_main), jnp.float32),
        grid_spec=pltpu.PrefetchScalarGridSpec(
            num_scalar_prefetch=0,
            grid=(grid_b,),
            in_specs=[
                pl.BlockSpec((tile_b, D), lambda i: (i, 0)),   # streamed f32 x tiles
                pl.BlockSpec((D, _H2), lambda i: (0, 0)),      # VMEM-resident folded weight
                pl.BlockSpec((1, _H2), lambda i: (0, 0)),
                pl.BlockSpec((1, _H2), lambda i: (0, 0)),
                pl.BlockSpec((1, 1), lambda i: (0, 0)),
            ],
            out_specs=pl.BlockSpec((1, tile_b), lambda i: (0, i)),  # lane-dense output row
        ),
        compiler_params=pltpu.CompilerParams(
            dimension_semantics=("parallel",),
            vmem_limit_bytes=vlimit),
        cost_estimate=_cost(B_main, D, x_item, w_item),
    )(x, w12, b12, w3_row, b3)


def fold_params(w1, b1, w2, b2, w3, b3, *, compute_dtype=jnp.float32):
    """One-time algebraic fold of Linear_1 -> dropout(p=0, identity) -> linear_2.

    Weights are stored (in, out). Returns (w12, b12, w3_row, b3):
      w12 (D,128) in compute_dtype (bf16 allowed; accumulation stays f32 in-kernel),
      b12 (1,128) f32, w3_row (1,128) f32, b3 (1,1) f32.
    Do this once outside the per-step path; re-folding per call costs a D x 256 x 128 matmul.
    """
    w1 = jnp.asarray(w1, jnp.float32)
    w2 = jnp.asarray(w2, jnp.float32)
    b1 = jnp.asarray(b1, jnp.float32).reshape(1, -1)
    b2 = jnp.asarray(b2, jnp.float32).reshape(1, -1)
    w12 = (w1 @ w2).astype(compute_dtype)                     # (D, 128)
    b12 = b1 @ w2 + b2                                        # (1, 128)
    w3_row = jnp.asarray(w3, jnp.float32).reshape(1, _H2)     # (1, 128)
    b3f = jnp.asarray(b3, jnp.float32).reshape(1, 1)          # (1, 1)
    return w12, b12, w3_row, b3f


def classification_head(x, folded_params, *, tile_b=None):
    """Fused forward pass on pre-folded params. x: (B, D) -> (B, 1) f32 sigmoid outputs."""
    w12, b12, w3_row, b3 = folded_params
    B, D = x.shape
    assert w12.shape == (D, _H2)
    budget = _vmem_budget_cap()
    x_item = jnp.dtype(x.dtype).itemsize
    w_item = jnp.dtype(w12.dtype).itemsize
    if tile_b is None:
        tile_b = _pick_tile_b(B, D, x_item, w_item, budget)
    else:
        tile_b = max(128, ((int(tile_b) + 127) // 128) * 128)  # lane-dense out block => mult of 128

    if B <= tile_b:
        # Small batch: per-grid-step overhead would dominate -> single grid point.
        return _single_shot_call(x, w12, b12, w3_row, b3, budget).reshape(B, 1)

    out_main = _tiled_call(x, w12, b12, w3_row, b3, tile_b, budget)     # (1, B_main)
    B_main = out_main.shape[1]
    if B_main == B:
        return out_main.reshape(B, 1)
    # Remainder rows (< tile_b) via the full-block single-shot path — no jnp.pad copy of x.
    out_rem = _single_shot_call(x[B_main:], w12, b12, w3_row, b3, budget)
    return jnp.concatenate([out_main, out_rem], axis=1).reshape(B, 1)


def classification_layer(x, w1, b1, w2, b2, w3, b3, *, dropout_rate=0.0,
                         compute_dtype=jnp.float32, tile_b=None):
    """Convenience wrapper (folds per call). For repeated calls fold once with fold_params()."""
    if dropout_rate != 0.0:
        # TODO(synk): p>0 dropout (pltpu.prng_* between Linear_1 and linear_2) would forbid the
        # W1@W2 fold; the reference module uses the default p=0 (identity).
        raise NotImplementedError("dropout_rate > 0 not supported by the fused kernel")
    folded = fold_params(w1, b1, w2, b2, w3, b3, compute_dtype=compute_dtype)
    return classification_head(x, folded, tile_b=tile_b)


def init_params(key, dim):
    """Deterministic PyTorch-style uniform init; weights stored as (in, out)."""
    def linear_init(k, fan_in, fan_out):
        kw, kb = jax.random.split(k)
        bound = 1.0 / jnp.sqrt(fan_in)
        w = jax.random.uniform(kw, (fan_in, fan_out), jnp.float32, -bound, bound)
        b = jax.random.uniform(kb, (1, fan_out), jnp.float32, -bound, bound)
        return w, b

    k1, k2, k3 = jax.random.split(key, 3)
    w1, b1 = linear_init(k1, dim, 256)
    w2, b2 = linear_init(k2, 256, 128)
    w3, b3 = linear_init(k3, 128, 1)
    return w1, b1, w2, b2, w3, b3


def _reference(x, w1, b1, w2, b2, w3, b3):
    # Unfolded f32 reference matching the PyTorch module's math.
    h = x @ w1 + b1                      # Linear_1
    h = jnp.maximum(h @ w2 + b2, 0.0)    # dropout(p=0) -> linear_2 -> ReLU
    return jax.nn.sigmoid(h @ w3 + b3)   # Linear_3 -> sigmoid


if __name__ == "__main__":
    key = jax.random.PRNGKey(0)
    k_p, k_x1, k_x2 = jax.random.split(key, 3)

    D = 32
    raw = init_params(k_p, D)

    # One-time parameter folds (hoisted out of the per-call path).
    folded_f32 = fold_params(*raw, compute_dtype=jnp.float32)
    folded_bf16 = fold_params(*raw, compute_dtype=jnp.bfloat16)

    # --- small batch -> single-shot (grid=()) path, f32 compute ---
    B_small = 8
    x_small = jax.random.normal(k_x1, (B_small, D), dtype=jnp.float32)
    out_small = jax.block_until_ready(classification_head(x_small, folded_f32))
    ref_small = _reference(x_small, *raw)
    assert out_small.shape == (B_small, 1)
    assert jnp.allclose(out_small, ref_small, atol=1e-3), "small-batch mismatch vs reference"

    # --- larger batch with an explicit tile to exercise the tiled + remainder path
    #     (auto tile_b would single-shot a batch this small); bf16 matmul, f32 epilogue ---
    B_large = 1100
    x_large = jax.random.normal(k_x2, (B_large, D), dtype=jnp.float32)
    out_large = jax.block_until_ready(
        classification_head(x_large, folded_bf16, tile_b=256))
    ref_large = _reference(x_large, *raw)
    assert out_large.shape == (B_large, 1)
    assert jnp.allclose(out_large, ref_large, atol=3e-2), "tiled-batch mismatch vs reference"

    # Convenience wrapper exercised once for completeness.
    out_conv = jax.block_until_ready(classification_layer(x_small, *raw))
    assert jnp.allclose(out_conv, ref_small, atol=1e-3), "wrapper mismatch vs reference"

    print("KERNEL_OK")
</pallas_src>

<mosaic_0001>
module attributes {stable_mosaic.version = 11 : i64} {
  func.func @_head_kernel(%arg0: memref<8x32xf32, #tpu.memory_space<vmem>>, %arg1: memref<32x128xf32, #tpu.memory_space<vmem>>, %arg2: memref<1x128xf32, #tpu.memory_space<vmem>>, %arg3: memref<1x128xf32, #tpu.memory_space<vmem>>, %arg4: memref<1x1xf32, #tpu.memory_space<vmem>>, %arg5: memref<1x8xf32, #tpu.memory_space<vmem>>) attributes {dimension_semantics = [], scalar_prefetch = 0 : i64, scratch_operands = 0 : i64, tpu.core_type = #tpu.core_type<tc>} {
    %c0 = arith.constant 0 : index
    %c0_0 = arith.constant 0 : index
    %0 = vector.load %arg0[%c0, %c0_0] : memref<8x32xf32, #tpu.memory_space<vmem>>, vector<8x32xf32>
    %c0_1 = arith.constant 0 : index
    %c0_2 = arith.constant 0 : index
    %1 = vector.load %arg1[%c0_1, %c0_2] : memref<32x128xf32, #tpu.memory_space<vmem>>, vector<32x128xf32>
    %cst = arith.constant dense<0.000000e+00> : vector<8x128xf32>
    %2 = tpu.matmul %0, %1, %cst {dimension_numbers = #tpu.dot_dimension_numbers<[1], [0], [0], [1], [0, 0, 1, 1], [], []>} : vector<8x32xf32>, vector<32x128xf32>, vector<8x128xf32> -> vector<8x128xf32>
    %c0_3 = arith.constant 0 : index
    %c0_4 = arith.constant 0 : index
    %3 = vector.load %arg2[%c0_3, %c0_4] : memref<1x128xf32, #tpu.memory_space<vmem>>, vector<1x128xf32>
    %4 = vector.broadcast %3 : vector<1x128xf32> to vector<8x128xf32>
    %5 = arith.addf %2, %4 : vector<8x128xf32>
    %cst_5 = arith.constant 0.000000e+00 : f32
    %6 = vector.broadcast %cst_5 : f32 to vector<8x128xf32>
    %7 = arith.maximumf %5, %6 : vector<8x128xf32>
    %c0_6 = arith.constant 0 : index
    %c0_7 = arith.constant 0 : index
    %8 = vector.load %arg3[%c0_6, %c0_7] : memref<1x128xf32, #tpu.memory_space<vmem>>, vector<1x128xf32>
    %cst_8 = arith.constant dense<0.000000e+00> : vector<1x8xf32>
    %9 = tpu.matmul %8, %7, %cst_8 {dimension_numbers = #tpu.dot_dimension_numbers<[1], [1], [0], [0], [0, 0, 1, 0], [], []>} : vector<1x128xf32>, vector<8x128xf32>, vector<1x8xf32> -> vector<1x8xf32>
    %c0_9 = arith.constant 0 : index
    %c0_10 = arith.constant 0 : index
    %10 = vector.load %arg4[%c0_9, %c0_10] : memref<1x1xf32, #tpu.memory_space<vmem>>, vector<1x1xf32>
    %11 = vector.broadcast %10 : vector<1x1xf32> to vector<1x8xf32>
    %12 = arith.addf %9, %11 : vector<1x8xf32>
    %cst_11 = arith.constant 5.000000e-01 : f32
    %13 = vector.broadcast %cst_11 : f32 to vector<1x8xf32>
    %14 = arith.mulf %13, %12 : vector<1x8xf32>
    %15 = math.tanh %14 : vector<1x8xf32>
    %cst_12 = arith.constant 5.000000e-01 : f32
    %16 = vector.broadcast %cst_12 : f32 to vector<1x8xf32>
    %17 = arith.mulf %16, %15 : vector<1x8xf32>
    %cst_13 = arith.constant 5.000000e-01 : f32
    %18 = vector.broadcast %cst_13 : f32 to vector<1x8xf32>
    %19 = arith.addf %17, %18 : vector<1x8xf32>
    %c0_14 = arith.constant 0 : index
    %c0_15 = arith.constant 0 : index
    %20 = vector.load %arg5[%c0_14, %c0_15] : memref<1x8xf32, #tpu.memory_space<vmem>>, vector<1x8xf32>
    tpu.vector_store %arg5[%c0_14, %c0_15], %19 {strides = array<i32>} : memref<1x8xf32, #tpu.memory_space<vmem>>, vector<1x8xf32>,
    return
  }
}

</mosaic_0001>

<llo_original>
// kernel: tpu_custom_call.1
$region0: #{tpu_custom_call.1}
  #allocation0 [shape = 'u32[]', space=smem, size = 0x4, offset = 0x4, fixed_abs, tag = 'smem constant byte address 0x4 - core index']
  #allocation1 [shape = 'u32[144,128]{1,0:T(1,128)}', space=vmem, size = 0x12000, scoped, tag = 'internal scratch']
  #allocation2 [shape = 'f32[1,1]{1,0:T(1,128)S(1)}', space=vmem, size = 0x200, scoped, tag = 'scoped memory for tpu_custom_call.1']
  %s0 = inlined_call_operand.hbm [shape: f32[8,32], index: 0, kind: input, shape index: {}]
  %s1 = inlined_call_operand.hbm [shape: f32[32,128], index: 1, kind: input, shape index: {}]
  %s2 = inlined_call_operand.vmem [shape: f32[1,128], index: 2, kind: input, shape index: {}]
  %s3 = inlined_call_operand.vmem [shape: f32[1,128], index: 3, kind: input, shape index: {}]
  %s4 = inlined_call_operand.<no memory space> [shape: f32[1,1], index: 4, kind: input, shape index: {}]
  %s5 = inlined_call_operand.hbm [shape: f32[1,8], index: 5, kind: output, shape index: {}]
  %s6 = sld [smem:[#allocation0]]
  $region38: #{tpu_custom_call.1} parent=0
    _
  %s8 = ssub.s32 1, %s6
  %s9 = scalar_select 0, %s8, %s6
  %v10 = vstv %s4
  %11 = vst [vmem:[#allocation2] sm:$0x1] %v10
  $region1: #{tpu_custom_call.1} parent=0
    #allocation3 [shape = 'u8[4096]{0}', space=vmem, size = 0x1000, scoped, tag = 'input window, operand 0, single buffered']
    #allocation4 [shape = 's32[1]{0}', space=sflag, size = 0x4, scoped, tag = 'scoped memory for tpu_custom_call.1']
    #allocation5 [shape = 's32[1]{0}', space=sflag, size = 0x4, scoped, tag = 'scoped memory for tpu_custom_call.1']
    #allocation6 [shape = 'u8[16384]{0}', space=vmem, size = 0x4000, scoped, tag = 'input window, operand 1, single buffered']
    #allocation7 [shape = 's32[1]{0}', space=sflag, size = 0x4, scoped, tag = 'scoped memory for tpu_custom_call.1']
    #allocation8 [shape = 'u8[512]{0}', space=vmem, size = 0x400, scoped, tag = 'output window, operand 0, single buffered']
    %12 = vsyncpa [#allocation4], 0
    %13 = vsyncpa [#allocation7], 0
    %14 = vsyncpa [#allocation5], 0
    // Predicated region
    $region2: #{tpu_custom_call.1} parent=1 // pred_check
      _
    $region3: #{tpu_custom_call.1} parent=1 // pred_check_branch
      %16 = sbr.rel (0) target = $region5
    $region4: #{tpu_custom_call.1} parent=1 // pred_region
      %s18 = ssub.s32 128, 128
      %19 = vsyncadd [#allocation4], %s18
      %s21 = sshll.u32 [#allocation3], 4
      %s22 = int_to_ptr.vmem [resolvable:$true] %s21
      %24 = dma.hbm_to_vmem [thread:$0]  %s0, 128, %s22, [#allocation4]
    $region5: #{tpu_custom_call.1} parent=1 // pred_fallthru
      _
    // Predicated region
    $region6: #{tpu_custom_call.1} parent=1 // pred_check
      _
    $region7: #{tpu_custom_call.1} parent=1 // pred_check_branch
      %26 = sbr.rel (0) target = $region9
    $region8: #{tpu_custom_call.1} parent=1 // pred_region
      %s28 = ssub.s32 512, 512
      %29 = vsyncadd [#allocation7], %s28
      %s30 = sshll.u32 [#allocation6], 4
      %s31 = int_to_ptr.vmem [resolvable:$true] %s30
      %36 = dma.hbm_to_vmem [thread:$0]  %s1, 512, %s31, [#allocation7], 128, 128, 8
    $region9: #{tpu_custom_call.1} parent=1 // pred_fallthru
      _
    // Predicated region
    $region10: #{tpu_custom_call.1} parent=1 // pred_check
      _
    $region11: #{tpu_custom_call.1} parent=1 // pred_check_branch
      %38 = sbr.rel (0) target = $region13
    $region12: #{tpu_custom_call.1} parent=1 // pred_region
      _
    $region13: #{tpu_custom_call.1} parent=1 // pred_fallthru
      _
    // Predicated region
    $region14: #{tpu_custom_call.1} parent=1 // pred_check
      _
    $region15: #{tpu_custom_call.1} parent=1 // pred_check_branch
      %40 = sbr.rel (0) target = $region17
    $region16: #{tpu_custom_call.1} parent=1 // pred_region
      _
    $region17: #{tpu_custom_call.1} parent=1 // pred_fallthru
      _
    // Predicated region
    $region18: #{tpu_custom_call.1} parent=1 // pred_check
      _
    $region19: #{tpu_custom_call.1} parent=1 // pred_check_branch
      %42 = sbr.rel (0) target = $region21
    $region20: #{tpu_custom_call.1} parent=1 // pred_region
      _
    $region21: #{tpu_custom_call.1} parent=1 // pred_fallthru
      _
    // Predicated region
    $region22: #{tpu_custom_call.1} parent=1 // pred_check
      _
    $region23: #{tpu_custom_call.1} parent=1 // pred_check_branch
      %44 = sbr.rel (0) target = $region25
    $region24: #{tpu_custom_call.1} parent=1 // pred_region
      %45 = dma.done [#allocation4], 128
    $region25: #{tpu_custom_call.1} parent=1 // pred_fallthru
      _
    // Predicated region
    $region26: #{tpu_custom_call.1} parent=1 // pred_check
      _
    $region27: #{tpu_custom_call.1} parent=1 // pred_check_branch
      %47 = sbr.rel (0) target = $region29
    $region28: #{tpu_custom_call.1} parent=1 // pred_region
      %48 = dma.done [#allocation7], 512
    $region29: #{tpu_custom_call.1} parent=1 // pred_fallthru
      _
    %v49 = vld [vmem:[#allocation3] sm:$0xff]
    %v50 = vld [vmem:[#allocation6] sm:$0xff]
    %v51 = vld [vmem:[#allocation6 + $0x8] sm:$0xff]
    %v52 = vld [vmem:[#allocation6 + $0x10] sm:$0xff]
    %v53 = vld [vmem:[#allocation6 + $0x18] sm:$0xff]
    %v54 = vld [vmem:[%s2] sm:$0x1]
    %v56 = vlaneseq
    %v57 = vshrl.u32 %v56, 7
    %v58 = vsub.s32 0, %v57
    %v59 = vrot.slane %v54, %v58
    %vm61 = vcmask 261120
    %v63 = vsel %vm61, %v49, 0
    %65 = vmatprep.subr.mxu0 0.0
    %66 = vmatpush1.msra.mxu0 0.0
    %67 = vmatprep.subr.mxu0 0.0
    %68 = vmatpush1.msra.mxu0 0.0
    %69 = vmatprep.subr.mxu0 0.0
    %70 = vmatpush1.msra.mxu0 0.0
    %71 = vmatprep.subr.mxu0 0.0
    %72 = vmatpush1.msra.mxu0 0.0
    %73 = vmatprep.subr.mxu0 0.0
    %74 = vmatpush1.msra.mxu0 0.0
    %75 = vmatprep.subr.mxu0 0.0
    %76 = vmatpush1.msra.mxu0 0.0
    %77 = vmatprep.subr.mxu0 0.0
    %78 = vmatpush1.msra.mxu0 0.0
    %79 = vmatprep.subr.mxu0 0.0
    %80 = vmatpush1.msra.mxu0 0.0
    %81 = vmatprep.subr.mxu0 0.0
    %82 = vmatpush1.msra.mxu0 0.0
    %83 = vmatprep.subr.mxu0 0.0
    %84 = vmatpush1.msra.mxu0 0.0
    %85 = vmatprep.subr.mxu0 0.0
    %86 = vmatpush1.msra.mxu0 0.0
    %87 = vmatprep.subr.mxu0 0.0
    %88 = vmatpush1.msra.mxu0 0.0
    %89 = vmatprep.subr.mxu0 0.0
    %90 = vmatpush1.msra.mxu0 %v53
    %91 = vmatprep.subr.mxu0 0.0
    %92 = vmatpush1.msra.mxu0 %v52
    %93 = vmatprep.subr.mxu0 0.0
    %94 = vmatpush1.msra.mxu0 %v51
    %95 = vmatprep.subr.mxu0 0.0
    %96 = vmatpush1.msra.mxu0 %v50
    %97 = vmatprep.subr.mxu0 0.0
    %98 = vmatpush2.msra.mxu0 0.0
    %99 = vmatprep.subr.mxu0 0.0
    %100 = vmatpush2.msra.mxu0 0.0
    %101 = vmatprep.subr.mxu0 0.0
    %102 = vmatpush2.msra.mxu0 0.0
    %103 = vmatprep.subr.mxu0 0.0
    %104 = vmatpush2.msra.mxu0 0.0
    %105 = vmatprep.subr.mxu0 0.0
    %106 = vmatpush2.msra.mxu0 0.0
    %107 = vmatprep.subr.mxu0 0.0
    %108 = vmatpush2.msra.mxu0 0.0
    %109 = vmatprep.subr.mxu0 0.0
    %110 = vmatpush2.msra.mxu0 0.0
    %111 = vmatprep.subr.mxu0 0.0
    %112 = vmatpush2.msra.mxu0 0.0
    %113 = vmatprep.subr.mxu0 0.0
    %114 = vmatpush2.msra.mxu0 0.0
    %115 = vmatprep.subr.mxu0 0.0
    %116 = vmatpush2.msra.mxu0 0.0
    %117 = vmatprep.subr.mxu0 0.0
    %118 = vmatpush2.msra.mxu0 0.0
    %119 = vmatprep.subr.mxu0 0.0
    %120 = vmatpush2.msra.mxu0 0.0
    %121 = vmatprep.subr.mxu0 0.0
    %122 = vmatpush2.msra.mxu0 0.0
    %123 = vmatprep.subr.mxu0 0.0
    %124 = vmatpush2.msra.mxu0 0.0
    %125 = vmatprep.subr.mxu0 0.0
    %126 = vmatpush2.msra.mxu0 0.0
    %127 = vmatprep.subr.mxu0 0.0
    %128 = vmatpush2.msra.mxu0 0.0
    %129 = vmatprep.mubr.f32.mxu0 0.0
    %130 = vmatmul.mubr.f32.gmra.mxu0 %v63
    %v131 = vpop.f32.mrf.mxu0
    %v132 = vadd.f32 %v59, %v131
    %v133 = vpop.f32.mrf.mxu0
    %134 = vdwg.mxu0
    %v135 = vmax.f32 %v132, 0.0
    %v136 = vld [vmem:[%s3] sm:$0x1]
    %v137 = vld [vmem:[#allocation2] sm:$0x1]
    %139 = vset.pattern.permute.xlu0 0
    %140 = vperm.xlu0 %139, %v137
    %v141 = vpop.permute.xlu0 %140
    %v143 = vlaneseq
    %v144 = vshrl.u32 %v143, 7
    %v145 = vsub.s32 0, %v144
    %v146 = vrot.slane %v141, %v145
    %147 = vmatprep.subr.mxu0 0.0
    %148 = vmatpush1.xpose.msra.mxu0 0.0
    %149 = vmatprep.subr.mxu0 0.0
    %150 = vmatpush1.xpose.msra.mxu0 0.0
    %151 = vmatprep.subr.mxu0 0.0
    %152 = vmatpush1.xpose.msra.mxu0 0.0
    %153 = vmatprep.subr.mxu0 0.0
    %154 = vmatpush1.xpose.msra.mxu0 0.0
    %155 = vmatprep.subr.mxu0 0.0
    %156 = vmatpush1.xpose.msra.mxu0 0.0
    %157 = vmatprep.subr.mxu0 0.0
    %158 = vmatpush1.xpose.msra.mxu0 0.0
    %159 = vmatprep.subr.mxu0 0.0
    %160 = vmatpush1.xpose.msra.mxu0 0.0
    %161 = vmatprep.subr.mxu0 0.0
    %162 = vmatpush1.xpose.msra.mxu0 0.0
    %163 = vmatprep.subr.mxu0 0.0
    %164 = vmatpush1.xpose.msra.mxu0 0.0
    %165 = vmatprep.subr.mxu0 0.0
    %166 = vmatpush1.xpose.msra.mxu0 0.0
    %167 = vmatprep.subr.mxu0 0.0
    %168 = vmatpush1.xpose.msra.mxu0 0.0
    %169 = vmatprep.subr.mxu0 0.0
    %170 = vmatpush1.xpose.msra.mxu0 0.0
    %171 = vmatprep.subr.mxu0 0.0
    %172 = vmatpush1.xpose.msra.mxu0 0.0
    %173 = vmatprep.subr.mxu0 0.0
    %174 = vmatpush1.xpose.msra.mxu0 0.0
    %175 = vmatprep.subr.mxu0 0.0
    %176 = vmatpush1.xpose.msra.mxu0 0.0
    %177 = vmatprep.subr.mxu0 0.0
    %178 = vmatpush1.xpose.msra.mxu0 %v135
    %179 = vmatprep.subr.mxu0 0.0
    %180 = vmatpush2.xpose.msra.mxu0 0.0
    %181 = vmatprep.subr.mxu0 0.0
    %182 = vmatpush2.xpose.msra.mxu0 0.0
    %183 = vmatprep.subr.mxu0 0.0
    %184 = vmatpush2.xpose.msra.mxu0 0.0
    %185 = vmatprep.subr.mxu0 0.0
    %186 = vmatpush2.xpose.msra.mxu0 0.0
    %187 = vmatprep.subr.mxu0 0.0
    %188 = vmatpush2.xpose.msra.mxu0 0.0
    %189 = vmatprep.subr.mxu0 0.0
    %190 = vmatpush2.xpose.msra.mxu0 0.0
    %191 = vmatprep.subr.mxu0 0.0
    %192 = vmatpush2.xpose.msra.mxu0 0.0
    %193 = vmatprep.subr.mxu0 0.0
    %194 = vmatpush2.xpose.msra.mxu0 0.0
    %195 = vmatprep.subr.mxu0 0.0
    %196 = vmatpush2.xpose.msra.mxu0 0.0
    %197 = vmatprep.subr.mxu0 0.0
    %198 = vmatpush2.xpose.msra.mxu0 0.0
    %199 = vmatprep.subr.mxu0 0.0
    %200 = vmatpush2.xpose.msra.mxu0 0.0
    %201 = vmatprep.subr.mxu0 0.0
    %202 = vmatpush2.xpose.msra.mxu0 0.0
    %203 = vmatprep.subr.mxu0 0.0
    %204 = vmatpush2.xpose.msra.mxu0 0.0
    %205 = vmatprep.subr.mxu0 0.0
    %206 = vmatpush2.xpose.msra.mxu0 0.0
    %207 = vmatprep.subr.mxu0 0.0
    %208 = vmatpush2.xpose.msra.mxu0 0.0
    %209 = vmatprep.subr.mxu0 0.0
    %210 = vmatpush2.xpose.msra.mxu0 0.0
    %211 = vmatprep.mubr.f32.mxu0 0.0
    %212 = vmatmul.mubr.f32.gmra.mxu0 %v136
    %v213 = vpop.f32.mrf.mxu0
    %v214 = vadd.f32 %v146, %v213
    %v215 = vpop.f32.mrf.mxu0
    %216 = vdwg.mxu0
    %v217 = vmul.f32 %v214, 0.5
    %v218 = vtanh.pop %v217
    %v219 = vmul.f32 %v218, 0.5
    %v220 = vadd.f32 %v219, 0.5
    %vm221 = vcmask 57344
    %222 = vst.msk [vmem:[#allocation8] sm:$0x1] %vm221, %v220
    // Predicated region
    $region30: #{tpu_custom_call.1} parent=1 // pred_check
      _
    $region31: #{tpu_custom_call.1} parent=1 // pred_check_branch
      %224 = sbr.rel (0) target = $region33
    $region32: #{tpu_custom_call.1} parent=1 // pred_region
      %s226 = ssub.s32 16, 16
      %227 = vsyncadd [#allocation5], %s226
      %s229 = sshll.u32 [#allocation8], 4
      %s230 = int_to_ptr.vmem [resolvable:$true] %s229
      %232 = dma.vmem_to_hbm [thread:$0]  %s230, 16, %s5, [#allocation5]
    $region33: #{tpu_custom_call.1} parent=1 // pred_fallthru
      _
    // Predicated region
    $region34: #{tpu_custom_call.1} parent=1 // pred_check
      _
    $region35: #{tpu_custom_call.1} parent=1 // pred_check_branch
      %234 = sbr.rel (0) target = $region37
    $region36: #{tpu_custom_call.1} parent=1 // pred_region
      %235 = dma.done [#allocation5], 16
    $region37: #{tpu_custom_call.1} parent=1 // pred_fallthru
      _
    %236 = vsyncpa [#allocation4], 1
    %237 = vsyncpa [#allocation7], 1
    %238 = vsyncpa [#allocation5], 1

</llo_original>
